<compile_context>
chip_gen: v6e
topology: v6e:2x2x1
jax: 0.10.0
libtpu: 0.0.40
codegen_flags: <defaults>
</compile_context>

<pallas_src>
import math

import jax
import jax.numpy as jnp
from jax.experimental import pallas as pl
from jax.experimental.pallas import tpu as pltpu


def _round_up(a, m):
    return (a + m - 1) // m * m


def _make_siren_kernel(omega_0):
    omega = float(omega_0)  # static hyperparameter, folded into the kernel

    def kernel(x_ref, w_ref, b_ref, o_ref):
        # x_ref: (TN, K)   w_ref: (K, M)   b_ref: (1, M) f32   o_ref: (TN, M)
        z = jnp.dot(x_ref[...], w_ref[...], preferred_element_type=jnp.float32)
        z = z + b_ref[...]                                     # f32 bias, row broadcast
        o_ref[...] = jnp.sin(omega * z).astype(o_ref.dtype)    # f32 sin argument

    return kernel


def prepare_siren_params(w, b, compute_dtype=jnp.bfloat16):
    """One-time conversion of PyTorch-layout params into the kernel layout.

    w: (M, K) nn.Linear weight, b: (M,) bias.
    Returns w_t: (K, M) in compute_dtype, b2: (1, M) in f32.
    """
    w_t = jnp.asarray(w).T.astype(compute_dtype)
    b2 = jnp.asarray(b).reshape(1, -1).astype(jnp.float32)
    return w_t, b2


def _choose_tile_rows(N, K, M, in_itemsize, out_itemsize, tile_rows,
                      vmem_budget=12 << 20):
    # Sublane packing: bf16 packs 2 rows / sublane (16-row tiles), f32 -> 8 rows.
    row_align = 8 * max(1, 4 // min(in_itemsize, out_itemsize))
    tn = _round_up(min(tile_rows, N), row_align)
    # Keep >= 2 batch tiles when possible so the "parallel" axis can use both
    # TensorCores on v7x (no-op on single-TC v5e/v6e).
    if N > 2 * row_align:
        tn = min(tn, _round_up(-(-N // 2), row_align))
    # Cap the double-buffered per-step VMEM footprint: x & y tiles + weights + bias.
    def footprint(t):
        return (2 * t * (K * in_itemsize + M * out_itemsize)
                + 2 * (K * M * in_itemsize + M * 4))
    while tn > row_align and footprint(tn) > vmem_budget:
        tn = max(row_align, _round_up(tn // 2, row_align))
    return tn


def siren_layer(x, w_t, b2, omega_0, *, out_dtype=None, tile_rows=1024):
    """SIREN layer forward:  sin(omega_0 * (x @ W^T + b)).

    x:   (..., K) input
    w_t: (K, M)   weight, already transposed (see prepare_siren_params)
    b2:  (1, M)   bias, f32
    """
    *lead, K = x.shape
    Kw, M = w_t.shape
    assert K == Kw and b2.shape == (1, M)

    compute_dtype = w_t.dtype
    if out_dtype is None:
        out_dtype = compute_dtype
    if x.dtype != compute_dtype:
        x = x.astype(compute_dtype)

    N = 1
    for d in lead:
        N *= d
    x2 = x.reshape(N, K)

    in_itemsize = jnp.dtype(compute_dtype).itemsize
    out_itemsize = jnp.dtype(out_dtype).itemsize
    TN = _choose_tile_rows(N, K, M, in_itemsize, out_itemsize, tile_rows)
    grid = (pl.cdiv(N, TN),)

    out = pl.pallas_call(
        _make_siren_kernel(omega_0),
        out_shape=jax.ShapeDtypeStruct((N, M), out_dtype),
        grid=grid,
        in_specs=[
            pl.BlockSpec((TN, K), lambda i: (i, 0)),   # x: tiled over batch rows
            pl.BlockSpec((K, M), lambda i: (0, 0)),    # W^T: resident, constant index
            pl.BlockSpec((1, M), lambda i: (0, 0)),    # bias: resident, constant index
        ],
        out_specs=pl.BlockSpec((TN, M), lambda i: (i, 0)),
        compiler_params=pltpu.CompilerParams(
            dimension_semantics=("parallel",),          # megacore sharding on v7x
        ),
        cost_estimate=pl.CostEstimate(
            flops=2 * N * K * M,
            transcendentals=N * M,
            bytes_accessed=(N * K * in_itemsize + K * M * in_itemsize
                            + M * 4 + N * M * out_itemsize),
        ),
    )(x2, w_t, b2)

    return out.reshape(*lead, M)


def init_siren_params(key, in_features, out_features, is_first, omega_0):
    """Deterministic init matching SirenLayer.init_weights (uniform ranges)."""
    kw, kb = jax.random.split(key)
    if is_first:
        bound_w = 1.0 / in_features
    else:
        bound_w = math.sqrt(6.0 / in_features) / omega_0
    # PyTorch nn.Linear default bias init: U(-1/sqrt(in), 1/sqrt(in))
    bound_b = 1.0 / math.sqrt(in_features)
    w = jax.random.uniform(kw, (out_features, in_features),
                           minval=-bound_w, maxval=bound_w, dtype=jnp.float32)
    b = jax.random.uniform(kb, (out_features,),
                           minval=-bound_b, maxval=bound_b, dtype=jnp.float32)
    return w, b


if __name__ == "__main__":
    key = jax.random.PRNGKey(0)
    k_x, k_p = jax.random.split(key)

    batch = 16
    in_features = 32
    out_features = 32
    omega_0 = 120.0
    is_first = True

    x = jax.random.uniform(k_x, (batch, in_features),
                           minval=-1.0, maxval=1.0, dtype=jnp.float32)
    w, b = init_siren_params(k_p, in_features, out_features, is_first, omega_0)
    y_ref = jnp.sin(omega_0 * (x @ w.T + b))

    # f32 path: exact match against the plain-JAX reference.
    w_t32, b2 = prepare_siren_params(w, b, compute_dtype=jnp.float32)
    y = jax.block_until_ready(siren_layer(x, w_t32, b2, omega_0))
    assert y.shape == (batch, out_features) and y.dtype == jnp.float32
    assert jnp.allclose(y, y_ref, atol=1e-4, rtol=1e-4), "f32 mismatch vs reference"

    # bf16 default hot path (bf16 x / W / y, f32 MXU accumulation + f32 sin tail),
    # checked against a bf16-input / f32-accumulation emulated reference.
    w_tbf, b2bf = prepare_siren_params(w, b)  # bf16 by default
    y_bf16 = jax.block_until_ready(siren_layer(x, w_tbf, b2bf, omega_0))
    assert y_bf16.shape == (batch, out_features) and y_bf16.dtype == jnp.bfloat16
    xb = x.astype(jnp.bfloat16).astype(jnp.float32)
    wb = w.astype(jnp.bfloat16).astype(jnp.float32)
    y_bf16_ref = jnp.sin(omega_0 * (xb @ wb.T + b))
    assert jnp.allclose(y_bf16.astype(jnp.float32), y_bf16_ref,
                        atol=2e-2, rtol=2e-2), "bf16 mismatch vs reference"

    # Ragged batch (N not a multiple of the row tile): exercises the masked last
    # block write instead of a wrapper-side pad + crop.
    n2 = 40
    x_r = jax.random.uniform(jax.random.PRNGKey(1), (n2, in_features),
                             minval=-1.0, maxval=1.0, dtype=jnp.float32)
    y_r = jax.block_until_ready(siren_layer(x_r, w_t32, b2, omega_0))
    y_r_ref = jnp.sin(omega_0 * (x_r @ w.T + b))
    assert y_r.shape == (n2, out_features)
    assert jnp.allclose(y_r, y_r_ref, atol=1e-4, rtol=1e-4), "ragged-tile mismatch"

    print("KERNEL_OK")
</pallas_src>

<mosaic_0001>
module attributes {stable_mosaic.version = 11 : i64} {
  func.func @kernel(%arg0: i32, %arg1: memref<16x32xf32, #tpu.memory_space<vmem>>, %arg2: memref<32x32xf32, #tpu.memory_space<vmem>>, %arg3: memref<1x32xf32, #tpu.memory_space<vmem>>, %arg4: memref<16x32xf32, #tpu.memory_space<vmem>>) attributes {dimension_semantics = [#tpu.dimension_semantics<parallel>], iteration_bounds = array<i64: 1>, scalar_prefetch = 0 : i64, scratch_operands = 0 : i64, tpu.core_type = #tpu.core_type<tc>, window_params = [{transform_indices = @transform_0, window_bounds = array<i64: 16, 32>}, {pipeline_mode = #tpu.pipeline_mode<synchronous>, transform_indices = @transform_1, window_bounds = array<i64: 32, 32>}, {pipeline_mode = #tpu.pipeline_mode<synchronous>, transform_indices = @transform_2, window_bounds = array<i64: 1, 32>}, {transform_indices = @transform_3, window_bounds = array<i64: 16, 32>}]} {
    %c0 = arith.constant 0 : index
    %c0_0 = arith.constant 0 : index
    %0 = vector.load %arg1[%c0, %c0_0] : memref<16x32xf32, #tpu.memory_space<vmem>>, vector<16x32xf32>
    %c0_1 = arith.constant 0 : index
    %c0_2 = arith.constant 0 : index
    %1 = vector.load %arg2[%c0_1, %c0_2] : memref<32x32xf32, #tpu.memory_space<vmem>>, vector<32x32xf32>
    %cst = arith.constant dense<0.000000e+00> : vector<16x32xf32>
    %2 = tpu.matmul %0, %1, %cst {dimension_numbers = #tpu.dot_dimension_numbers<[1], [0], [0], [1], [0, 0, 1, 1], [], []>} : vector<16x32xf32>, vector<32x32xf32>, vector<16x32xf32> -> vector<16x32xf32>
    %c0_3 = arith.constant 0 : index
    %c0_4 = arith.constant 0 : index
    %3 = vector.load %arg3[%c0_3, %c0_4] : memref<1x32xf32, #tpu.memory_space<vmem>>, vector<1x32xf32>
    %4 = vector.broadcast %3 : vector<1x32xf32> to vector<16x32xf32>
    %5 = arith.addf %2, %4 : vector<16x32xf32>
    %cst_5 = arith.constant 1.200000e+02 : f32
    %6 = vector.broadcast %cst_5 : f32 to vector<16x32xf32>
    %7 = arith.mulf %6, %5 : vector<16x32xf32>
    %8 = math.sin %7 : vector<16x32xf32>
    %c0_6 = arith.constant 0 : index
    %c0_7 = arith.constant 0 : index
    %9 = vector.load %arg4[%c0_6, %c0_7] : memref<16x32xf32, #tpu.memory_space<vmem>>, vector<16x32xf32>
    tpu.vector_store %arg4[%c0_6, %c0_7], %8 {strides = array<i32>} : memref<16x32xf32, #tpu.memory_space<vmem>>, vector<16x32xf32>,
    return
  }
  func.func @transform_0(%arg0: i32) -> (i32, i32) {
    %c0_i32 = arith.constant 0 : i32
    %c0_i32_0 = arith.constant 0 : i32
    return %arg0, %c0_i32 : i32, i32
  }
  func.func @transform_1(%arg0: i32) -> (i32, i32) {
    %c0_i32 = arith.constant 0 : i32
    %c0_i32_0 = arith.constant 0 : i32
    %c0_i32_1 = arith.constant 0 : i32
    return %c0_i32, %c0_i32_0 : i32, i32
  }
  func.func @transform_2(%arg0: i32) -> (i32, i32) {
    %c0_i32 = arith.constant 0 : i32
    %c0_i32_0 = arith.constant 0 : i32
    %c0_i32_1 = arith.constant 0 : i32
    return %c0_i32, %c0_i32_0 : i32, i32
  }
  func.func @transform_3(%arg0: i32) -> (i32, i32) {
    %c0_i32 = arith.constant 0 : i32
    %c0_i32_0 = arith.constant 0 : i32
    return %arg0, %c0_i32 : i32, i32
  }
}

</mosaic_0001>

<llo_original>
// kernel: tpu_custom_call.1
$region0: #{tpu_custom_call.1}
  #allocation0 [shape = 'u32[]', space=smem, size = 0x4, offset = 0x4, fixed_abs, tag = 'smem constant byte address 0x4 - core index']
  #allocation1 [shape = 'u32[144,128]{1,0:T(1,128)}', space=vmem, size = 0x12000, scoped, tag = 'internal scratch']
  %s0 = inlined_call_operand.hbm [shape: f32[16,32], index: 0, kind: input, shape index: {}]
  %s1 = inlined_call_operand.hbm [shape: f32[32,32], index: 1, kind: input, shape index: {}]
  %s2 = inlined_call_operand.vmem [shape: f32[1,32], index: 2, kind: input, shape index: {}]
  %s3 = inlined_call_operand.hbm [shape: f32[16,32], index: 3, kind: output, shape index: {}]
  %s4 = sld [smem:[#allocation0]]
  $region30: #{tpu_custom_call.1} parent=0
    _
  %s6 = ssub.s32 1, %s4
  %s7 = scalar_select 0, %s6, %s4
  $region1: #{tpu_custom_call.1} parent=0
    #allocation2 [shape = 'u8[8192]{0}', space=vmem, size = 0x2000, scoped, tag = 'input window, operand 0, single buffered']
    #allocation3 [shape = 's32[1]{0}', space=sflag, size = 0x4, scoped, tag = 'scoped memory for tpu_custom_call.1']
    #allocation4 [shape = 's32[1]{0}', space=sflag, size = 0x4, scoped, tag = 'scoped memory for tpu_custom_call.1']
    #allocation5 [shape = 'u8[16384]{0}', space=vmem, size = 0x4000, scoped, tag = 'input window, operand 1, single buffered']
    #allocation6 [shape = 's32[1]{0}', space=sflag, size = 0x4, scoped, tag = 'scoped memory for tpu_custom_call.1']
    #allocation7 [shape = 'u8[8192]{0}', space=vmem, size = 0x2000, scoped, tag = 'output window, operand 0, single buffered']
    %8 = vsyncpa [#allocation3], 0
    %9 = vsyncpa [#allocation6], 0
    %10 = vsyncpa [#allocation4], 0
    // Predicated region
    $region2: #{tpu_custom_call.1} parent=1 // pred_check
      _
    $region3: #{tpu_custom_call.1} parent=1 // pred_check_branch
      %12 = sbr.rel (0) target = $region5
    $region4: #{tpu_custom_call.1} parent=1 // pred_region
      %s14 = ssub.s32 256, 256
      %15 = vsyncadd [#allocation3], %s14
      %s16 = sshll.u32 [#allocation2], 4
      %s17 = int_to_ptr.vmem [resolvable:$true] %s16
      %22 = dma.hbm_to_vmem [thread:$0]  %s0, 256, %s17, [#allocation3], 128, 128, 8
    $region5: #{tpu_custom_call.1} parent=1 // pred_fallthru
      _
    // Predicated region
    $region6: #{tpu_custom_call.1} parent=1 // pred_check
      _
    $region7: #{tpu_custom_call.1} parent=1 // pred_check_branch
      %24 = sbr.rel (0) target = $region9
    $region8: #{tpu_custom_call.1} parent=1 // pred_region
      %s26 = ssub.s32 512, 512
      %27 = vsyncadd [#allocation6], %s26
      %s28 = sshll.u32 [#allocation5], 4
      %s29 = int_to_ptr.vmem [resolvable:$true] %s28
      %34 = dma.hbm_to_vmem [thread:$0]  %s1, 512, %s29, [#allocation6], 128, 128, 8
    $region9: #{tpu_custom_call.1} parent=1 // pred_fallthru
      _
    // Predicated region
    $region10: #{tpu_custom_call.1} parent=1 // pred_check
      _
    $region11: #{tpu_custom_call.1} parent=1 // pred_check_branch
      %36 = sbr.rel (0) target = $region13
    $region12: #{tpu_custom_call.1} parent=1 // pred_region
      _
    $region13: #{tpu_custom_call.1} parent=1 // pred_fallthru
      _
    // Predicated region
    $region14: #{tpu_custom_call.1} parent=1 // pred_check
      _
    $region15: #{tpu_custom_call.1} parent=1 // pred_check_branch
      %38 = sbr.rel (0) target = $region17
    $region16: #{tpu_custom_call.1} parent=1 // pred_region
      %39 = dma.done [#allocation3], 256
    $region17: #{tpu_custom_call.1} parent=1 // pred_fallthru
      _
    // Predicated region
    $region18: #{tpu_custom_call.1} parent=1 // pred_check
      _
    $region19: #{tpu_custom_call.1} parent=1 // pred_check_branch
      %41 = sbr.rel (0) target = $region21
    $region20: #{tpu_custom_call.1} parent=1 // pred_region
      %42 = dma.done [#allocation6], 512
    $region21: #{tpu_custom_call.1} parent=1 // pred_fallthru
      _
    %v43 = vld [vmem:[#allocation2] sm:$0xff]
    %v44 = vld [vmem:[#allocation2 + $0x8] sm:$0xff]
    %v45 = vld [vmem:[#allocation5] sm:$0xff]
    %v46 = vld [vmem:[#allocation5 + $0x8] sm:$0xff]
    %v47 = vld [vmem:[#allocation5 + $0x10] sm:$0xff]
    %v48 = vld [vmem:[#allocation5 + $0x18] sm:$0xff]
    %v49 = vld [vmem:[%s2] sm:$0x1]
    %v51 = vlaneseq
    %v52 = vshrl.u32 %v51, 7
    %v53 = vsub.s32 0, %v52
    %v54 = vrot.slane %v49, %v53
    %vm56 = vcmask 261120
    %v58 = vsel %vm56, %v43, 0
    %v61 = vsel %vm56, %v44, 0
    %63 = vmatprep.subr.mxu0 0.0
    %64 = vmatpush1.msra.mxu0 0.0
    %65 = vmatprep.subr.mxu0 0.0
    %66 = vmatpush1.msra.mxu0 0.0
    %67 = vmatprep.subr.mxu0 0.0
    %68 = vmatpush1.msra.mxu0 0.0
    %69 = vmatprep.subr.mxu0 0.0
    %70 = vmatpush1.msra.mxu0 0.0
    %71 = vmatprep.subr.mxu0 0.0
    %72 = vmatpush1.msra.mxu0 0.0
    %73 = vmatprep.subr.mxu0 0.0
    %74 = vmatpush1.msra.mxu0 0.0
    %75 = vmatprep.subr.mxu0 0.0
    %76 = vmatpush1.msra.mxu0 0.0
    %77 = vmatprep.subr.mxu0 0.0
    %78 = vmatpush1.msra.mxu0 0.0
    %79 = vmatprep.subr.mxu0 0.0
    %80 = vmatpush1.msra.mxu0 0.0
    %81 = vmatprep.subr.mxu0 0.0
    %82 = vmatpush1.msra.mxu0 0.0
    %83 = vmatprep.subr.mxu0 0.0
    %84 = vmatpush1.msra.mxu0 0.0
    %85 = vmatprep.subr.mxu0 0.0
    %86 = vmatpush1.msra.mxu0 0.0
    %87 = vmatprep.subr.mxu0 0.0
    %88 = vmatpush1.msra.mxu0 %v48
    %89 = vmatprep.subr.mxu0 0.0
    %90 = vmatpush1.msra.mxu0 %v47
    %91 = vmatprep.subr.mxu0 0.0
    %92 = vmatpush1.msra.mxu0 %v46
    %93 = vmatprep.subr.mxu0 0.0
    %94 = vmatpush1.msra.mxu0 %v45
    %95 = vmatprep.subr.mxu0 0.0
    %96 = vmatpush2.msra.mxu0 0.0
    %97 = vmatprep.subr.mxu0 0.0
    %98 = vmatpush2.msra.mxu0 0.0
    %99 = vmatprep.subr.mxu0 0.0
    %100 = vmatpush2.msra.mxu0 0.0
    %101 = vmatprep.subr.mxu0 0.0
    %102 = vmatpush2.msra.mxu0 0.0
    %103 = vmatprep.subr.mxu0 0.0
    %104 = vmatpush2.msra.mxu0 0.0
    %105 = vmatprep.subr.mxu0 0.0
    %106 = vmatpush2.msra.mxu0 0.0
    %107 = vmatprep.subr.mxu0 0.0
    %108 = vmatpush2.msra.mxu0 0.0
    %109 = vmatprep.subr.mxu0 0.0
    %110 = vmatpush2.msra.mxu0 0.0
    %111 = vmatprep.subr.mxu0 0.0
    %112 = vmatpush2.msra.mxu0 0.0
    %113 = vmatprep.subr.mxu0 0.0
    %114 = vmatpush2.msra.mxu0 0.0
    %115 = vmatprep.subr.mxu0 0.0
    %116 = vmatpush2.msra.mxu0 0.0
    %117 = vmatprep.subr.mxu0 0.0
    %118 = vmatpush2.msra.mxu0 0.0
    %119 = vmatprep.subr.mxu0 0.0
    %120 = vmatpush2.msra.mxu0 0.0
    %121 = vmatprep.subr.mxu0 0.0
    %122 = vmatpush2.msra.mxu0 0.0
    %123 = vmatprep.subr.mxu0 0.0
    %124 = vmatpush2.msra.mxu0 0.0
    %125 = vmatprep.subr.mxu0 0.0
    %126 = vmatpush2.msra.mxu0 0.0
    %127 = vmatprep.mubr.f32.mxu0 0.0
    %128 = vmatmul.mubr.f32.gmra.mxu0 %v58
    %v129 = vpop.f32.mrf.mxu0
    %v130 = vadd.f32 %v54, %v129
    %v131 = vpop.f32.mrf.mxu0
    %132 = vmatprep.mubr.f32.mxu0 0.0
    %133 = vmatmul.mubr.f32.gmra.mxu0 %v61
    %v134 = vpop.f32.mrf.mxu0
    %v135 = vadd.f32 %v54, %v134
    %v136 = vpop.f32.mrf.mxu0
    %137 = vdwg.mxu0
    %v138 = vmul.f32 %v130, 120.0
    %v139 = vmul.f32 %v135, 120.0
    %v140 = vand.u32 2147483647, %v138
    %vm141 = vcmp.le.f32.partialorder %v140, 0.7853982
    %vm142 = vcmp.lt.s32.totalorder %v138, 0
    %v143 = vand.u32 %v138, 2139095040
    %v144 = vshrl.u32 %v143, 23
    %v145 = vsub.s32 %v144, 127
    %v146 = vand.u32 2147483647, %v138
    %v147 = vand.u32 %v146, 8388607
    %v148 = vor.u32 %v147, 8388608
    %v149 = vsub.s32 0, %v148
    %v150 = vadd.s32 %v145, 1
    %vm151 = vcmp.gt.s32.totalorder %v150, 0
    %v152 = vsel %vm151, %v150, 0
    %v153 = vshrl.u32 %v152, 5
    %v154 = vand.u32 %v152, 31
    %v155 = vsub.s32 32, %v154
    %v156 = vshrl.u32 683565275, %v155
    %v157 = vshll.u32 683565275, %v154
    %v158 = vshrl.u32 2475754826, %v155
    %v159 = vor.u32 %v157, %v158
    %v160 = vshll.u32 2475754826, %v154
    %v161 = vshrl.u32 2131351028, %v155
    %v162 = vor.u32 %v160, %v161
    %v163 = vshll.u32 2131351028, %v154
    %v164 = vshrl.u32 2102212464, %v155
    %v165 = vor.u32 %v163, %v164
    %v166 = vshll.u32 2102212464, %v154
    %v167 = vshrl.u32 920167782, %v155
    %v168 = vor.u32 %v166, %v167
    %v169 = vshll.u32 920167782, %v154
    %v170 = vshrl.u32 1326507024, %v155
    %v171 = vor.u32 %v169, %v170
    %vm172 = vcmp.lt.s32.totalorder %v153, 1
    %vm173 = vcmp.lt.s32.totalorder %v153, 2
    %vm174 = vcmp.lt.s32.totalorder %v153, 3
    %vm175 = vcmp.lt.s32.totalorder %v153, 4
    %v176 = vsel %vm172, %v156, %v159
    %v177 = vsel %vm175, %v165, 2102212464
    %v178 = vsel %vm174, %v162, %v177
    %v179 = vsel %vm173, %v176, %v178
    %v180 = vsel %vm172, %v159, %v162
    %v181 = vsel %vm175, %v168, 920167782
    %v182 = vsel %vm174, %v165, %v181
    %v183 = vsel %vm173, %v180, %v182
    %v184 = vsel %vm172, %v162, %v165
    %v185 = vsel %vm175, %v171, 1326507024
    %v186 = vsel %vm174, %v168, %v185
    %v187 = vsel %vm173, %v184, %v186
    %v188 = vshll.u32 %v148, 8
    %v189 = vmul.u32.u64.compose %v188, %v187
    %v190 = vextract.low.u32 %v189
    %v191 = vextract.high.u32 %v189
    %v192 = vmul.u32.u64.compose %v188, %v183
    %v193 = vextract.low.u32 %v192
    %v194 = vextract.high.u32 %v192
    %v195 = vmul.u32 %v188, %v179
    %v196 = vadd.s32 %v191, %v193
    %vm197 = vc.u32 %v191, %v193
    %v198 = vadd.s32 %v194, 1
    %v199 = vsel %vm197, %v198, %v194
    %v200 = vadd.s32 %v195, %v199
    %v201 = vadd.s32 %v200, 536870912
    %v202 = vshrl.u32 %v201, 30
    %v203 = vshll.u32 %v202, 30
    %v204 = vsub.s32 %v200, %v203
    %vm205 = vcmp.lt.s32.totalorder %v204, 0
    %v206 = vsub.s32 0, %v204
    %v207 = vsel %vm205, %v206, %v204
    %v208 = vclz %v207
    %v209 = vsub.s32 %v208, 2
    %vm210 = vcmp.gt.s32.totalorder 0, %v209
    %v211 = vsel %vm210, 0, %v209
    %v212 = vsub.s32 32, %v211
    %v213 = vshll.u32 %v204, %v211
    %v214 = vshrl.u32 %v196, %v212
    %v215 = vor.u32 %v213, %v214
    %v216 = vsub.s32 4294967266, %v211
    %v217 = vadd.s32 %v216, 127
    %v218 = vshll.u32 %v217, 23
    %v219 = vor.u32 4788187, %v218
    %v220 = vand.u32 2147483647, %v219
    %v222 = vcvt.s32.f32 %v215
    %v223 = vmul.f32 %v222, %v220
    %v224 = vxor.u32 %v223, 2147483648
    %v225 = vsel %vm142, %v224, %v223
    %v226 = vsub.s32 4, %v202
    %v227 = vsel %vm142, %v226, %v202
    %v228 = vsel %vm141, %v138, %v225
    %v229 = vsel %vm141, 0, %v227
    %v230 = vcosq.f32.pop %v228
    %v231 = vsinq.f32.pop %v228
    %vm232 = vweird.f32 %v138
    %v233 = vadd.s32 %v229, 3
    %v234 = vand.u32 %v233, 3
    %vm235 = vcmp.lt.s32.totalorder %v234, 2
    %vm236 = vcmp.eq.s32.totalorder %v234, 0
    %v237 = vxor.u32 %v231, 2147483648
    %v238 = vsel %vm236, %v230, %v237
    %vm239 = vcmp.eq.s32.totalorder %v234, 2
    %v240 = vxor.u32 %v230, 2147483648
    %v241 = vsel %vm239, %v240, %v231
    %v242 = vsel %vm235, %v238, %v241
    %v243 = vsel %vm232, nan, %v242
    %v244 = vand.u32 2147483647, %v139
    %vm245 = vcmp.le.f32.partialorder %v244, 0.7853982
    %vm246 = vcmp.lt.s32.totalorder %v139, 0
    %v247 = vand.u32 %v139, 2139095040
    %v248 = vshrl.u32 %v247, 23
    %v249 = vsub.s32 %v248, 127
    %v250 = vand.u32 2147483647, %v139
    %v251 = vand.u32 %v250, 8388607
    %v252 = vor.u32 %v251, 8388608
    %v253 = vsub.s32 0, %v252
    %v254 = vadd.s32 %v249, 1
    %vm255 = vcmp.gt.s32.totalorder %v254, 0
    %v256 = vsel %vm255, %v254, 0
    %v257 = vshrl.u32 %v256, 5
    %v258 = vand.u32 %v256, 31
    %v259 = vsub.s32 32, %v258
    %v260 = vshrl.u32 683565275, %v259
    %v261 = vshll.u32 683565275, %v258
    %v262 = vshrl.u32 2475754826, %v259
    %v263 = vor.u32 %v261, %v262
    %v264 = vshll.u32 2475754826, %v258
    %v265 = vshrl.u32 2131351028, %v259
    %v266 = vor.u32 %v264, %v265
    %v267 = vshll.u32 2131351028, %v258
    %v268 = vshrl.u32 2102212464, %v259
    %v269 = vor.u32 %v267, %v268
    %v270 = vshll.u32 2102212464, %v258
    %v271 = vshrl.u32 920167782, %v259
    %v272 = vor.u32 %v270, %v271
    %v273 = vshll.u32 920167782, %v258
    %v274 = vshrl.u32 1326507024, %v259
    %v275 = vor.u32 %v273, %v274
    %vm276 = vcmp.lt.s32.totalorder %v257, 1
    %vm277 = vcmp.lt.s32.totalorder %v257, 2
    %vm278 = vcmp.lt.s32.totalorder %v257, 3
    %vm279 = vcmp.lt.s32.totalorder %v257, 4
    %v280 = vsel %vm276, %v260, %v263
    %v281 = vsel %vm279, %v269, 2102212464
    %v282 = vsel %vm278, %v266, %v281
    %v283 = vsel %vm277, %v280, %v282
    %v284 = vsel %vm276, %v263, %v266
    %v285 = vsel %vm279, %v272, 920167782
    %v286 = vsel %vm278, %v269, %v285
    %v287 = vsel %vm277, %v284, %v286
    %v288 = vsel %vm276, %v266, %v269
    %v289 = vsel %vm279, %v275, 1326507024
    %v290 = vsel %vm278, %v272, %v289
    %v291 = vsel %vm277, %v288, %v290
    %v292 = vshll.u32 %v252, 8
    %v293 = vmul.u32.u64.compose %v292, %v291
    %v294 = vextract.low.u32 %v293
    %v295 = vextract.high.u32 %v293
    %v296 = vmul.u32.u64.compose %v292, %v287
    %v297 = vextract.low.u32 %v296
    %v298 = vextract.high.u32 %v296
    %v299 = vmul.u32 %v292, %v283
    %v300 = vadd.s32 %v295, %v297
    %vm301 = vc.u32 %v295, %v297
    %v302 = vadd.s32 %v298, 1
    %v303 = vsel %vm301, %v302, %v298
    %v304 = vadd.s32 %v299, %v303
    %v305 = vadd.s32 %v304, 536870912
    %v306 = vshrl.u32 %v305, 30
    %v307 = vshll.u32 %v306, 30
    %v308 = vsub.s32 %v304, %v307
    %vm309 = vcmp.lt.s32.totalorder %v308, 0
    %v310 = vsub.s32 0, %v308
    %v311 = vsel %vm309, %v310, %v308
    %v312 = vclz %v311
    %v313 = vsub.s32 %v312, 2
    %vm314 = vcmp.gt.s32.totalorder 0, %v313
    %v315 = vsel %vm314, 0, %v313
    %v316 = vsub.s32 32, %v315
    %v317 = vshll.u32 %v308, %v315
    %v318 = vshrl.u32 %v300, %v316
    %v319 = vor.u32 %v317, %v318
    %v320 = vsub.s32 4294967266, %v315
    %v321 = vadd.s32 %v320, 127
    %v322 = vshll.u32 %v321, 23
    %v323 = vor.u32 4788187, %v322
    %v324 = vand.u32 2147483647, %v323
    %v326 = vcvt.s32.f32 %v319
    %v327 = vmul.f32 %v326, %v324
    %v328 = vxor.u32 %v327, 2147483648
    %v329 = vsel %vm246, %v328, %v327
    %v330 = vsub.s32 4, %v306
    %v331 = vsel %vm246, %v330, %v306
    %v332 = vsel %vm245, %v139, %v329
    %v333 = vsel %vm245, 0, %v331
    %v334 = vcosq.f32.pop %v332
    %v335 = vsinq.f32.pop %v332
    %vm336 = vweird.f32 %v139
    %v337 = vadd.s32 %v333, 3
    %v338 = vand.u32 %v337, 3
    %vm339 = vcmp.lt.s32.totalorder %v338, 2
    %vm340 = vcmp.eq.s32.totalorder %v338, 0
    %v341 = vxor.u32 %v335, 2147483648
    %v342 = vsel %vm340, %v334, %v341
    %vm343 = vcmp.eq.s32.totalorder %v338, 2
    %v344 = vxor.u32 %v334, 2147483648
    %v345 = vsel %vm343, %v344, %v335
    %v346 = vsel %vm339, %v342, %v345
    %v347 = vsel %vm336, nan, %v346
    %348 = vst.msk [vmem:[#allocation7] sm:$0xff] %vm56, %v243
    %349 = vst.msk [vmem:[#allocation7 + $0x8] sm:$0xff] %vm56, %v347
    // Predicated region
    $region22: #{tpu_custom_call.1} parent=1 // pred_check
      _
    $region23: #{tpu_custom_call.1} parent=1 // pred_check_branch
      %351 = sbr.rel (0) target = $region25
    $region24: #{tpu_custom_call.1} parent=1 // pred_region
      %s353 = ssub.s32 256, 256
      %354 = vsyncadd [#allocation4], %s353
      %s355 = sshll.u32 [#allocation7], 4
      %s356 = int_to_ptr.vmem [resolvable:$true] %s355
      %361 = dma.vmem_to_hbm [thread:$0]  %s356, 256, %s3, [#allocation4], 128, 128, 8
    $region25: #{tpu_custom_call.1} parent=1 // pred_fallthru
      _
    // Predicated region
    $region26: #{tpu_custom_call.1} parent=1 // pred_check
      _
    $region27: #{tpu_custom_call.1} parent=1 // pred_check_branch
      %363 = sbr.rel (0) target = $region29
    $region28: #{tpu_custom_call.1} parent=1 // pred_region
      %364 = dma.done [#allocation4], 256
    $region29: #{tpu_custom_call.1} parent=1 // pred_fallthru
      _
    %365 = vsyncpa [#allocation3], 1
    %366 = vsyncpa [#allocation6], 1
    %367 = vsyncpa [#allocation4], 1

</llo_original>
